<compile_context>
chip_gen: v5e
topology: v5e:2x2
jax: 0.10.0
libtpu: 0.0.40
codegen_flags: <defaults>
</compile_context>

<pallas_src>
import functools

import jax
import jax.numpy as jnp
from jax.experimental import pallas as pl
from jax.experimental.pallas import tpu as pltpu


_LANE = 128
_VMEM_LIMIT_BYTES = 32 * 1024 * 1024       # safe scoped limit on v5e/v6e/v7x
_INPUT_DB_BUDGET_BYTES = 12 * 1024 * 1024  # double-buffered x-tile budget
_FAST_PATH_BYTES = 4 * 1024 * 1024         # whole-tensor fast path threshold


def _round_up(v, m):
    return (v + m - 1) // m * m


def _pick_batch_tile(n):
    # Multiple of 8 sublanes when possible; otherwise a single full-N block
    # (block dim equal to the full array dim is always legal).
    return 8 if n % 8 == 0 else n


# --------------------- fast path: single grid step ---------------------

def _sfcn_head_small_kernel(x_ref, w_ref, b_ref, o_ref):
    # x_ref: (N, C, S); w_ref: (C, K) pre-scaled by 1/S; b_ref: (1, K)
    pooled = jnp.sum(x_ref[...], axis=-1, dtype=jnp.float32)          # (N, C)
    out = jnp.dot(pooled, w_ref[...], preferred_element_type=jnp.float32)
    out = out + b_ref[...]
    o_ref[...] = out.astype(o_ref.dtype)


# --------------- tiled path: pipelined spatial reduction ---------------

def _sfcn_head_tiled_kernel(x_ref, w_ref, b_ref, o_ref, acc_ref, *, tail_valid):
    si = pl.program_id(1)
    n_s = pl.num_programs(1)

    @pl.when(si == 0)
    def _():
        acc_ref[...] = jnp.zeros_like(acc_ref)

    x = x_ref[...]                                                     # (TN, C, TS)
    if tail_valid is not None:
        # Last spatial tile extends past S: zero out the out-of-bounds lanes.
        lane = jax.lax.broadcasted_iota(jnp.int32, x.shape, dimension=2)
        valid = jnp.where(si == n_s - 1, tail_valid, x.shape[-1])
        x = jnp.where(lane < valid, x, jnp.zeros_like(x))

    # Raw spatial sums, accumulated in f32 (1/S folded into the weight).
    acc_ref[...] += jnp.sum(x, axis=-1, dtype=jnp.float32)             # (TN, C)

    @pl.when(si == n_s - 1)
    def _():
        # TODO(synk): nn.Dropout on the pooled features is identity in eval
        # mode; training-mode stochastic masking is intentionally not applied.
        out = jnp.dot(acc_ref[...], w_ref[...],
                      preferred_element_type=jnp.float32)              # (TN, K)
        out = out + b_ref[...]
        o_ref[...] = out.astype(o_ref.dtype)


# ------------------------------ wrapper ------------------------------

def improved_sfcn_head_forward(x_ncdhw, weight, bias, *,
                               spatial_tile=None, force_tiled=False):
    """Global-average-pool + 1x1x1 Conv3d head.

    x_ncdhw: (N, C, D, H, W); weight: (K, C) (torch Conv3d weight squeezed);
    bias: (K,).  Returns (N, K).
    """
    n, c, d, h, w = x_ncdhw.shape
    k = weight.shape[0]
    s = d * h * w
    x_flat = x_ncdhw.reshape(n, c, s)

    # Fold the 1/S mean scale into the (C, K) weight so the kernel's inner
    # loop is pure load + f32 accumulate.
    w_ck = jnp.transpose(weight).astype(jnp.float32) * (1.0 / s)
    b_2d = bias.reshape(1, k).astype(jnp.float32)

    itemsize = jnp.dtype(x_ncdhw.dtype).itemsize
    total_bytes = n * c * s * itemsize

    if not force_tiled and total_bytes <= _FAST_PATH_BYTES:
        # Tiny head (the default SFCN config): one grid step; per-step grid
        # overhead would dominate any tiled pipeline at these sizes.
        return pl.pallas_call(
            _sfcn_head_small_kernel,
            out_shape=jax.ShapeDtypeStruct((n, k), x_ncdhw.dtype),
            grid_spec=pl.GridSpec(
                grid=(1,),
                in_specs=[
                    pl.BlockSpec((n, c, s), lambda i: (0, 0, 0)),
                    pl.BlockSpec((c, k), lambda i: (0, 0)),
                    pl.BlockSpec((1, k), lambda i: (0, 0)),
                ],
                out_specs=pl.BlockSpec((n, k), lambda i: (0, 0)),
            ),
            compiler_params=pltpu.CompilerParams(
                dimension_semantics=("arbitrary",),
                vmem_limit_bytes=_VMEM_LIMIT_BYTES),
        )(x_flat, w_ck, b_2d)

    # ----------------------- tiled / pipelined path -----------------------
    tn = _pick_batch_tile(n)
    n_tiles = n // tn

    if spatial_tile is None:
        # Size the spatial tile for the double-buffered VMEM budget; keep it a
        # multiple of 128 lanes, aim for 512-2048, never exceed padded S.
        ts = _INPUT_DB_BUDGET_BYTES // (2 * tn * c * itemsize)
        ts = max(_LANE, (ts // _LANE) * _LANE)
        ts = min(ts, 2048)
    else:
        ts = _round_up(spatial_tile, _LANE)
    ts = min(ts, _round_up(s, _LANE))

    s_tiles = pl.cdiv(s, ts)
    tail = s % ts
    tail_valid = None if tail == 0 else tail

    kernel = functools.partial(_sfcn_head_tiled_kernel, tail_valid=tail_valid)

    return pl.pallas_call(
        kernel,
        out_shape=jax.ShapeDtypeStruct((n, k), x_ncdhw.dtype),
        grid_spec=pl.GridSpec(
            grid=(n_tiles, s_tiles),
            in_specs=[
                pl.BlockSpec((tn, c, ts), lambda ni, si: (ni, 0, si)),
                pl.BlockSpec((c, k), lambda ni, si: (0, 0)),
                pl.BlockSpec((1, k), lambda ni, si: (0, 0)),
            ],
            out_specs=pl.BlockSpec((tn, k), lambda ni, si: (ni, 0)),
            scratch_shapes=[pltpu.VMEM((tn, c), jnp.float32)],
        ),
        compiler_params=pltpu.CompilerParams(
            # Independent batch tiles lead ("parallel", shardable across v7x's
            # two TensorCores); spatial reduction axis is last and "arbitrary".
            dimension_semantics=("parallel", "arbitrary"),
            vmem_limit_bytes=_VMEM_LIMIT_BYTES),
    )(x_flat, w_ck, b_2d)


# ------------------------------- test -------------------------------

def _reference(x, weight, bias):
    n, c = x.shape[:2]
    pooled = jnp.mean(x.reshape(n, c, -1), axis=-1)
    return pooled @ weight.T + bias


if __name__ == "__main__":
    num_classes = 10
    C = 64  # fixed by the SFCN encoder output channels
    key = jax.random.PRNGKey(0)
    kx1, kx2, kx3, kw, kb = jax.random.split(key, 5)

    weight = jax.random.normal(kw, (num_classes, C), dtype=jnp.float32) * 0.05
    bias = jax.random.normal(kb, (num_classes,), dtype=jnp.float32) * 0.05

    # 1) Tiny default head shape -> fast path (grid=(1,)).
    x1 = jax.random.normal(kx1, (2, C, 4, 4, 4), dtype=jnp.float32)
    out1 = jax.block_until_ready(improved_sfcn_head_forward(x1, weight, bias))
    assert out1.shape == (2, num_classes)
    assert jnp.allclose(out1, _reference(x1, weight, bias), atol=1e-4, rtol=1e-4)

    # 2) Tiled path with a ragged spatial tail (masking exercised).
    x2 = jax.random.normal(kx2, (4, C, 6, 10, 14), dtype=jnp.float32)
    out2 = jax.block_until_ready(
        improved_sfcn_head_forward(x2, weight, bias,
                                   spatial_tile=256, force_tiled=True))
    assert out2.shape == (4, num_classes)
    assert jnp.allclose(out2, _reference(x2, weight, bias), atol=1e-4, rtol=1e-4)

    # 3) Tiled path with multiple batch tiles (parallel leading grid axis).
    x3 = jax.random.normal(kx3, (16, C, 6, 6, 6), dtype=jnp.float32)
    out3 = jax.block_until_ready(
        improved_sfcn_head_forward(x3, weight, bias,
                                   spatial_tile=128, force_tiled=True))
    assert out3.shape == (16, num_classes)
    assert jnp.allclose(out3, _reference(x3, weight, bias), atol=1e-4, rtol=1e-4)

    print("KERNEL_OK")
</pallas_src>

<mosaic_0001>
module attributes {stable_mosaic.version = 11 : i64} {
  func.func @_sfcn_head_small_kernel(%arg0: i32, %arg1: memref<2x64x64xf32, #tpu.memory_space<vmem>>, %arg2: memref<64x10xf32, #tpu.memory_space<vmem>>, %arg3: memref<1x10xf32, #tpu.memory_space<vmem>>, %arg4: memref<2x10xf32, #tpu.memory_space<vmem>>) attributes {dimension_semantics = [#tpu.dimension_semantics<arbitrary>], iteration_bounds = array<i64: 1>, scalar_prefetch = 0 : i64, scratch_operands = 0 : i64, tpu.core_type = #tpu.core_type<tc>, window_params = [{pipeline_mode = #tpu.pipeline_mode<synchronous>, transform_indices = @transform_0, window_bounds = array<i64: 2, 64, 64>}, {pipeline_mode = #tpu.pipeline_mode<synchronous>, transform_indices = @transform_1, window_bounds = array<i64: 64, 10>}, {pipeline_mode = #tpu.pipeline_mode<synchronous>, transform_indices = @transform_2, window_bounds = array<i64: 1, 10>}, {pipeline_mode = #tpu.pipeline_mode<synchronous>, transform_indices = @transform_3, window_bounds = array<i64: 2, 10>}]} {
    %c0 = arith.constant 0 : index
    %c0_0 = arith.constant 0 : index
    %c0_1 = arith.constant 0 : index
    %0 = vector.load %arg1[%c0, %c0_0, %c0_1] : memref<2x64x64xf32, #tpu.memory_space<vmem>>, vector<2x64x64xf32>
    %cst = arith.constant dense<0.000000e+00> : vector<2x64xf32>
    %1 = vector.multi_reduction <add>, %0, %cst [2] : vector<2x64x64xf32> to vector<2x64xf32>
    %c0_2 = arith.constant 0 : index
    %c0_3 = arith.constant 0 : index
    %2 = vector.load %arg2[%c0_2, %c0_3] : memref<64x10xf32, #tpu.memory_space<vmem>>, vector<64x10xf32>
    %cst_4 = arith.constant dense<0.000000e+00> : vector<2x10xf32>
    %3 = tpu.matmul %1, %2, %cst_4 {dimension_numbers = #tpu.dot_dimension_numbers<[1], [0], [0], [1], [0, 0, 1, 1], [], []>} : vector<2x64xf32>, vector<64x10xf32>, vector<2x10xf32> -> vector<2x10xf32>
    %c0_5 = arith.constant 0 : index
    %c0_6 = arith.constant 0 : index
    %4 = vector.load %arg3[%c0_5, %c0_6] : memref<1x10xf32, #tpu.memory_space<vmem>>, vector<1x10xf32>
    %5 = vector.broadcast %4 : vector<1x10xf32> to vector<2x10xf32>
    %6 = arith.addf %3, %5 : vector<2x10xf32>
    %c0_7 = arith.constant 0 : index
    %c0_8 = arith.constant 0 : index
    %7 = vector.load %arg4[%c0_7, %c0_8] : memref<2x10xf32, #tpu.memory_space<vmem>>, vector<2x10xf32>
    tpu.vector_store %arg4[%c0_7, %c0_8], %6 {strides = array<i32>} : memref<2x10xf32, #tpu.memory_space<vmem>>, vector<2x10xf32>,
    return
  }
  func.func @transform_0(%arg0: i32) -> (i32, i32, i32) {
    %c0_i32 = arith.constant 0 : i32
    %c0_i32_0 = arith.constant 0 : i32
    %c0_i32_1 = arith.constant 0 : i32
    %c0_i32_2 = arith.constant 0 : i32
    return %c0_i32, %c0_i32_0, %c0_i32_1 : i32, i32, i32
  }
  func.func @transform_1(%arg0: i32) -> (i32, i32) {
    %c0_i32 = arith.constant 0 : i32
    %c0_i32_0 = arith.constant 0 : i32
    %c0_i32_1 = arith.constant 0 : i32
    return %c0_i32, %c0_i32_0 : i32, i32
  }
  func.func @transform_2(%arg0: i32) -> (i32, i32) {
    %c0_i32 = arith.constant 0 : i32
    %c0_i32_0 = arith.constant 0 : i32
    %c0_i32_1 = arith.constant 0 : i32
    return %c0_i32, %c0_i32_0 : i32, i32
  }
  func.func @transform_3(%arg0: i32) -> (i32, i32) {
    %c0_i32 = arith.constant 0 : i32
    %c0_i32_0 = arith.constant 0 : i32
    %c0_i32_1 = arith.constant 0 : i32
    return %c0_i32, %c0_i32_0 : i32, i32
  }
}

</mosaic_0001>

<llo_original>
// kernel: tpu_custom_call.1
$region0: #{tpu_custom_call.1}
  #allocation0 [shape = 'u32[]', space=smem, size = 0x4, offset = 0x4, fixed_abs, tag = 'smem constant byte address 0x4 - core index']
  #allocation1 [shape = 'u32[72,128]{1,0:T(1,128)}', space=vmem, size = 0x9000, scoped, tag = 'internal scratch']
  %s0 = inlined_call_operand.hbm [shape: f32[2,64,64], index: 0, kind: input, shape index: {}]
  %s1 = inlined_call_operand.vmem [shape: f32[64,10], index: 1, kind: input, shape index: {}]
  %s2 = inlined_call_operand.vmem [shape: f32[1,10], index: 2, kind: input, shape index: {}]
  %s3 = inlined_call_operand.hbm [shape: f32[2,10], index: 3, kind: output, shape index: {}]
  %s4 = sld [smem:[#allocation0]]
  $region26: #{tpu_custom_call.1} parent=0
    _
  %s6 = ssub.s32 1, %s4
  %s7 = scalar_select 0, %s6, %s4
  $region1: #{tpu_custom_call.1} parent=0
    #allocation2 [shape = 'u8[65536]{0}', space=vmem, size = 0x10000, scoped, tag = 'input window, operand 0, single buffered']
    #allocation3 [shape = 's32[1]{0}', space=sflag, size = 0x4, scoped, tag = 'scoped memory for tpu_custom_call.1']
    #allocation4 [shape = 's32[1]{0}', space=sflag, size = 0x4, scoped, tag = 'scoped memory for tpu_custom_call.1']
    #allocation5 [shape = 'u8[1024]{0}', space=vmem, size = 0x400, scoped, tag = 'output window, operand 0, single buffered']
    %8 = vsyncpa [#allocation3], 0
    %9 = vsyncpa [#allocation4], 0
    // Predicated region
    $region2: #{tpu_custom_call.1} parent=1 // pred_check
      _
    $region3: #{tpu_custom_call.1} parent=1 // pred_check_branch
      %11 = sbr.rel (0) target = $region5
    $region4: #{tpu_custom_call.1} parent=1 // pred_region
      %13 = vsyncadd [#allocation3], 0
      %s14 = sshll.u32 %s0, 4
      %s15 = int_to_ptr.hbm [resolvable:$true] %s14
      %s16 = sshll.u32 [#allocation2], 4
      %s17 = int_to_ptr.vmem [resolvable:$true] %s16
      %22 = dma.hbm_to_vmem [thread:$0]  %s15, 2048, %s17, [#allocation3], 128, 128, 8
    $region5: #{tpu_custom_call.1} parent=1 // pred_fallthru
      _
    // Predicated region
    $region6: #{tpu_custom_call.1} parent=1 // pred_check
      _
    $region7: #{tpu_custom_call.1} parent=1 // pred_check_branch
      %24 = sbr.rel (0) target = $region9
    $region8: #{tpu_custom_call.1} parent=1 // pred_region
      _
    $region9: #{tpu_custom_call.1} parent=1 // pred_fallthru
      _
    // Predicated region
    $region10: #{tpu_custom_call.1} parent=1 // pred_check
      _
    $region11: #{tpu_custom_call.1} parent=1 // pred_check_branch
      %26 = sbr.rel (0) target = $region13
    $region12: #{tpu_custom_call.1} parent=1 // pred_region
      _
    $region13: #{tpu_custom_call.1} parent=1 // pred_fallthru
      _
    // Predicated region
    $region14: #{tpu_custom_call.1} parent=1 // pred_check
      _
    $region15: #{tpu_custom_call.1} parent=1 // pred_check_branch
      %28 = sbr.rel (0) target = $region17
    $region16: #{tpu_custom_call.1} parent=1 // pred_region
      %30 = dma.done [#allocation3], 2048
    $region17: #{tpu_custom_call.1} parent=1 // pred_fallthru
      _
    %v31 = vld [vmem:[#allocation2] sm:$0xff]
    %v32 = vld [vmem:[#allocation2 + $0x8] sm:$0xff]
    %v33 = vld [vmem:[#allocation2 + $0x10] sm:$0xff]
    %v34 = vld [vmem:[#allocation2 + $0x18] sm:$0xff]
    %v35 = vld [vmem:[#allocation2 + $0x20] sm:$0xff]
    %v36 = vld [vmem:[#allocation2 + $0x28] sm:$0xff]
    %v37 = vld [vmem:[#allocation2 + $0x30] sm:$0xff]
    %v38 = vld [vmem:[#allocation2 + $0x38] sm:$0xff]
    %v39 = vld [vmem:[#allocation2 + $0x40] sm:$0xff]
    %v40 = vld [vmem:[#allocation2 + $0x48] sm:$0xff]
    %v41 = vld [vmem:[#allocation2 + $0x50] sm:$0xff]
    %v42 = vld [vmem:[#allocation2 + $0x58] sm:$0xff]
    %v43 = vld [vmem:[#allocation2 + $0x60] sm:$0xff]
    %v44 = vld [vmem:[#allocation2 + $0x68] sm:$0xff]
    %v45 = vld [vmem:[#allocation2 + $0x70] sm:$0xff]
    %v46 = vld [vmem:[#allocation2 + $0x78] sm:$0xff]
    %vm47 = vcmask 523264
    %v48 = vsel %vm47, %v31, 0.0
    %49 = vadd.xlane.f32.xlu0 %v48
    %v50 = vpop.xlane.xlu0 %49
    %v51 = vsel %vm47, %v32, 0.0
    %52 = vadd.xlane.f32.xlu0 %v51
    %v53 = vpop.xlane.xlu0 %52
    %v54 = vsel %vm47, %v33, 0.0
    %55 = vadd.xlane.f32.xlu0 %v54
    %v56 = vpop.xlane.xlu0 %55
    %v57 = vsel %vm47, %v34, 0.0
    %58 = vadd.xlane.f32.xlu0 %v57
    %v59 = vpop.xlane.xlu0 %58
    %v60 = vsel %vm47, %v35, 0.0
    %61 = vadd.xlane.f32.xlu0 %v60
    %v62 = vpop.xlane.xlu0 %61
    %v63 = vsel %vm47, %v36, 0.0
    %64 = vadd.xlane.f32.xlu0 %v63
    %v65 = vpop.xlane.xlu0 %64
    %v66 = vsel %vm47, %v37, 0.0
    %67 = vadd.xlane.f32.xlu0 %v66
    %v68 = vpop.xlane.xlu0 %67
    %v69 = vsel %vm47, %v38, 0.0
    %70 = vadd.xlane.f32.xlu0 %v69
    %v71 = vpop.xlane.xlu0 %70
    %v72 = vsel %vm47, %v39, 0.0
    %73 = vadd.xlane.f32.xlu0 %v72
    %v74 = vpop.xlane.xlu0 %73
    %v75 = vsel %vm47, %v40, 0.0
    %76 = vadd.xlane.f32.xlu0 %v75
    %v77 = vpop.xlane.xlu0 %76
    %v78 = vsel %vm47, %v41, 0.0
    %79 = vadd.xlane.f32.xlu0 %v78
    %v80 = vpop.xlane.xlu0 %79
    %v81 = vsel %vm47, %v42, 0.0
    %82 = vadd.xlane.f32.xlu0 %v81
    %v83 = vpop.xlane.xlu0 %82
    %v84 = vsel %vm47, %v43, 0.0
    %85 = vadd.xlane.f32.xlu0 %v84
    %v86 = vpop.xlane.xlu0 %85
    %v87 = vsel %vm47, %v44, 0.0
    %88 = vadd.xlane.f32.xlu0 %v87
    %v89 = vpop.xlane.xlu0 %88
    %v90 = vsel %vm47, %v45, 0.0
    %91 = vadd.xlane.f32.xlu0 %v90
    %v92 = vpop.xlane.xlu0 %91
    %v93 = vsel %vm47, %v46, 0.0
    %94 = vadd.xlane.f32.xlu0 %v93
    %v95 = vpop.xlane.xlu0 %94
    %v96 = vld [vmem:[%s1] sm:$0xff]
    %v97 = vld [vmem:[%s1 + $0x8] sm:$0xff]
    %v98 = vld [vmem:[%s1 + $0x10] sm:$0xff]
    %v99 = vld [vmem:[%s1 + $0x18] sm:$0xff]
    %v100 = vld [vmem:[%s1 + $0x20] sm:$0xff]
    %v101 = vld [vmem:[%s1 + $0x28] sm:$0xff]
    %v102 = vld [vmem:[%s1 + $0x30] sm:$0xff]
    %v103 = vld [vmem:[%s1 + $0x38] sm:$0xff]
    %v104 = vld [vmem:[%s2] sm:$0x1]
    %v106 = vperm.slane %v104, 0
    %v124 = vlaneseq
    %v125 = vand.u32 %v124, 127
    %v126 = vperm.slane %v50, %v125
    %v127 = vadd.s32 %v125, 4294967288
    %v128 = vperm.slane %v53, %v127
    %vm129 = vcmask 130112
    %v130 = vsel %vm129, %v128, %v126
    %v131 = vadd.s32 %v125, 4294967280
    %v132 = vperm.slane %v56, %v131
    %vm133 = vcmask 195712
    %v134 = vsel %vm133, %v132, %v130
    %v135 = vadd.s32 %v125, 4294967272
    %v136 = vperm.slane %v59, %v135
    %vm137 = vcmask 261312
    %v138 = vsel %vm137, %v136, %v134
    %v139 = vadd.s32 %v125, 4294967264
    %v140 = vperm.slane %v62, %v139
    %vm141 = vcmask 326912
    %v142 = vsel %vm141, %v140, %v138
    %v143 = vadd.s32 %v125, 4294967256
    %v144 = vperm.slane %v65, %v143
    %vm145 = vcmask 392512
    %v146 = vsel %vm145, %v144, %v142
    %v147 = vadd.s32 %v125, 4294967248
    %v148 = vperm.slane %v68, %v147
    %vm149 = vcmask 458112
    %v150 = vsel %vm149, %v148, %v146
    %v151 = vadd.s32 %v125, 4294967240
    %v152 = vperm.slane %v71, %v151
    %vm153 = vcmask 523712
    %v154 = vsel %vm153, %v152, %v150
    %v155 = vperm.slane %v74, %v125
    %v156 = vperm.slane %v77, %v127
    %v157 = vsel %vm129, %v156, %v155
    %v158 = vperm.slane %v80, %v131
    %v159 = vsel %vm133, %v158, %v157
    %v160 = vperm.slane %v83, %v135
    %v161 = vsel %vm137, %v160, %v159
    %v162 = vperm.slane %v86, %v139
    %v163 = vsel %vm141, %v162, %v161
    %v164 = vperm.slane %v89, %v143
    %v165 = vsel %vm145, %v164, %v163
    %v166 = vperm.slane %v92, %v147
    %v167 = vsel %vm149, %v166, %v165
    %v168 = vperm.slane %v95, %v151
    %v169 = vsel %vm153, %v168, %v167
    %vm170 = vcmask 1041409
    %v171 = vsel %vm170, %v169, %v154
    %v172 = vsel %vm47, %v171, 0
    %174 = vmatpush.msra.mxu0 0.0
    %175 = vmatpush.msra.mxu0 0.0
    %176 = vmatpush.msra.mxu0 0.0
    %177 = vmatpush.msra.mxu0 0.0
    %178 = vmatpush.msra.mxu0 0.0
    %179 = vmatpush.msra.mxu0 0.0
    %180 = vmatpush.msra.mxu0 0.0
    %181 = vmatpush.msra.mxu0 0.0
    %182 = vmatpush.msra.mxu0 %v103
    %183 = vmatpush.msra.mxu0 %v102
    %184 = vmatpush.msra.mxu0 %v101
    %185 = vmatpush.msra.mxu0 %v100
    %186 = vmatpush.msra.mxu0 %v99
    %187 = vmatpush.msra.mxu0 %v98
    %188 = vmatpush.msra.mxu0 %v97
    %189 = vmatpush.msra.mxu0 %v96
    %190 = vmatmul.f32.gmra.mxu0 %v172
    %v191 = vpop.f32.mrf.mxu0
    %v192 = vadd.f32 %v106, %v191
    %193 = vdwg.mxu0
    %vm194 = vcmask 74752
    %195 = vst.msk [vmem:[#allocation5] sm:$0x3] %vm194, %v192
    // Predicated region
    $region18: #{tpu_custom_call.1} parent=1 // pred_check
      _
    $region19: #{tpu_custom_call.1} parent=1 // pred_check_branch
      %197 = sbr.rel (0) target = $region21
    $region20: #{tpu_custom_call.1} parent=1 // pred_region
      %199 = vsyncadd [#allocation4], 0
      %s201 = sshll.u32 [#allocation5], 4
      %s202 = int_to_ptr.vmem [resolvable:$true] %s201
      %s203 = sshll.u32 %s3, 4
      %s204 = int_to_ptr.hbm [resolvable:$true] %s203
      %206 = dma.vmem_to_hbm [thread:$0]  %s202, 32, %s204, [#allocation4]
    $region21: #{tpu_custom_call.1} parent=1 // pred_fallthru
      _
    // Predicated region
    $region22: #{tpu_custom_call.1} parent=1 // pred_check
      _
    $region23: #{tpu_custom_call.1} parent=1 // pred_check_branch
      %208 = sbr.rel (0) target = $region25
    $region24: #{tpu_custom_call.1} parent=1 // pred_region
      %210 = dma.done [#allocation4], 32
    $region25: #{tpu_custom_call.1} parent=1 // pred_fallthru
      _
    %211 = vsyncpa [#allocation3], 1
    %212 = vsyncpa [#allocation4], 1

</llo_original>
